<compile_context>
chip_gen: v7x
topology: tpu7x:2x2x1
jax: 0.10.0
libtpu: 0.0.40
codegen_flags: <defaults>
</compile_context>

<pallas_src>
import functools

import jax
import jax.numpy as jnp
from jax.experimental import pallas as pl
from jax.experimental.pallas import tpu as pltpu


def _spatial_attention_kernel(x_ref, w_ref, mask_ref, o_ref, *, width):
    # x_ref    : (Bt, C, HW)  VMEM
    # w_ref    : (18,)        SMEM  [0:9] avg taps (already scaled by 1/C),
    #                               [9:18] max taps, idx = di*3 + dj
    # mask_ref : (9, HW)      VMEM  per-tap 0/1 edge masks (flattened H*W)
    # o_ref    : (Bt, 1, HW)  VMEM
    _, C, HW = x_ref.shape

    # ---- fused single-pass channel reduction (running sum + running max) ----
    x0 = x_ref[:, 0, :].astype(jnp.float32)            # (Bt, HW)
    s_acc = x0                                          # channel sum (f32)
    m_acc = x0                                          # channel max (f32)
    for c in range(1, C):                               # static unroll, 1 pass
        xc = x_ref[:, c, :].astype(jnp.float32)
        s_acc = s_acc + xc
        m_acc = jnp.maximum(m_acc, xc)

    # ---- 3x3 conv as 9 roll-shifted accumulations ---------------------------
    acc = None
    for di in range(3):
        for dj in range(3):
            idx = di * 3 + dj
            # Combine both input channels of this tap first (pure VPU) so only
            # one shifted accumulation is needed per tap (9 shifts, not 18).
            tap = w_ref[idx] * s_acc + w_ref[9 + idx] * m_acc
            # Neighbor (i+di-1, j+dj-1) in flattened layout = roll by
            # -( (di-1)*W + (dj-1) ); wrap-around rows/cols are zeroed by the
            # precomputed edge mask (emulates the conv's zero padding).
            shift = (-((di - 1) * width + (dj - 1))) % HW
            if shift:
                tap = pltpu.roll(tap, shift=shift, axis=1)   # XLU lane rotate
            if idx != 4:                                 # center tap: no edge hit
                tap = tap * mask_ref[pl.ds(idx, 1), :]   # (1, HW) -> broadcast
            acc = tap if acc is None else acc + tap

    o_ref[:, 0, :] = jax.nn.sigmoid(acc).astype(o_ref.dtype)


def _pick_batch_tile(B, C, HW, itemsize=4, budget_bytes=48 << 20):
    """Largest divisor of B whose double-buffered in+out blocks fit the VMEM
    budget, keeping >=2 grid steps when possible (two TensorCores on v7x)."""
    per_elem = 2 * (C + 1) * HW * itemsize
    cap = max(1, budget_bytes // per_elem)
    target = B if B < 2 else min(cap, max(1, B // 2))
    bt = 1
    for d in range(1, min(target, B) + 1):
        if B % d == 0:
            bt = d
    return bt


def spatial_attention(x, conv_weight):
    """x: (B, C, H, W); conv_weight: (1, 2, 3, 3) OIHW -> (B, 1, H, W)."""
    B, C, H, W = x.shape
    HW = H * W

    # Lane-dense layout: flatten spatial dims so the lane axis is H*W.
    x_flat = x.reshape(B, C, HW)

    # Fold 1/C into the avg-branch taps -> kernel accumulates a raw channel sum.
    w2 = conv_weight.astype(jnp.float32).reshape(2, 9)
    w_flat = jnp.concatenate([w2[0] / jnp.float32(C), w2[1]], axis=0)     # (18,)

    # Precomputed 0/1 edge masks, one per 3x3 tap, flattened to (H*W,).
    row_ok = {
        -1: (jnp.arange(H) > 0).astype(jnp.float32),
        0: jnp.ones((H,), jnp.float32),
        1: (jnp.arange(H) < H - 1).astype(jnp.float32),
    }
    col_ok = {
        -1: (jnp.arange(W) > 0).astype(jnp.float32),
        0: jnp.ones((W,), jnp.float32),
        1: (jnp.arange(W) < W - 1).astype(jnp.float32),
    }
    masks = jnp.stack(
        [(row_ok[di - 1][:, None] * col_ok[dj - 1][None, :]).reshape(HW)
         for di in range(3) for dj in range(3)],
        axis=0,
    )                                                                      # (9, HW)

    Bt = _pick_batch_tile(B, C, HW)
    grid = (B // Bt,)

    # Scoped-VMEM limit sized to the blocks (inputs/outputs are double-buffered).
    in_bytes = Bt * C * HW * 4
    out_bytes = Bt * HW * 4
    mask_bytes = 9 * HW * 4
    vmem_limit = int(min(max(2 * (in_bytes + out_bytes + mask_bytes) + (4 << 20),
                             8 << 20),
                         56 << 20))

    kernel = functools.partial(_spatial_attention_kernel, width=W)

    out_flat = pl.pallas_call(
        kernel,
        out_shape=jax.ShapeDtypeStruct((B, 1, HW), x.dtype),
        grid=grid,
        in_specs=[
            pl.BlockSpec((Bt, C, HW), lambda b: (b, 0, 0)),
            pl.BlockSpec(memory_space=pltpu.MemorySpace.SMEM),
            pl.BlockSpec((9, HW), lambda b: (0, 0)),
        ],
        out_specs=pl.BlockSpec((Bt, 1, HW), lambda b: (b, 0, 0)),
        compiler_params=pltpu.CompilerParams(
            dimension_semantics=("parallel",),
            vmem_limit_bytes=vmem_limit,
        ),
    )(x_flat, w_flat, masks)

    return out_flat.reshape(B, 1, H, W)


def spatial_attention_ref(x, conv_weight):
    """Pure-JAX reference mirroring the PyTorch forward."""
    avg_out = jnp.mean(x, axis=1, keepdims=True)
    max_out = jnp.max(x, axis=1, keepdims=True)
    feat = jnp.concatenate([avg_out, max_out], axis=1)
    y = jax.lax.conv_general_dilated(
        feat, conv_weight, window_strides=(1, 1),
        padding=((1, 1), (1, 1)),
        dimension_numbers=("NCHW", "OIHW", "NCHW"),
    )
    return jax.nn.sigmoid(y)


if __name__ == "__main__":
    key = jax.random.PRNGKey(0)
    kx, kw = jax.random.split(key)

    B, C, H, W = 2, 4, 16, 16
    x = jax.random.normal(kx, (B, C, H, W), dtype=jnp.float32)

    # Conv2d(2, 1, 3, padding=1, bias=False) weight, kaiming-uniform-like scale.
    fan_in = 2 * 3 * 3
    bound = 1.0 / (fan_in ** 0.5)
    conv1_w = jax.random.uniform(
        kw, (1, 2, 3, 3), dtype=jnp.float32, minval=-bound, maxval=bound
    )

    out = spatial_attention(x, conv1_w)
    out = jax.block_until_ready(out)

    ref = spatial_attention_ref(x, conv1_w)
    assert out.shape == (B, 1, H, W)
    assert jnp.allclose(out, ref, atol=1e-5, rtol=1e-5), "mismatch vs reference"

    print("KERNEL_OK")
</pallas_src>

<mosaic_0001>
module attributes {stable_mosaic.version = 11 : i64} {
  func.func @_spatial_attention_kernel(%arg0: i32, %arg1: memref<1x4x256xf32, #tpu.memory_space<vmem>>, %arg2: memref<18xf32, #tpu.memory_space<smem>>, %arg3: memref<9x256xf32, #tpu.memory_space<vmem>>, %arg4: memref<1x1x256xf32, #tpu.memory_space<vmem>>) attributes {dimension_semantics = [#tpu.dimension_semantics<parallel>], iteration_bounds = array<i64: 2>, scalar_prefetch = 0 : i64, scratch_operands = 0 : i64, tpu.core_type = #tpu.core_type<tc>, window_params = [{transform_indices = @transform_0, window_bounds = array<i64: 1, 4, 256>}, {transform_indices = @transform_1, window_bounds = array<i64: 18>}, {pipeline_mode = #tpu.pipeline_mode<synchronous>, transform_indices = @transform_2, window_bounds = array<i64: 9, 256>}, {transform_indices = @transform_3, window_bounds = array<i64: 1, 1, 256>}]} {
    %c0 = arith.constant 0 : index
    %c0_0 = arith.constant 0 : index
    %c0_1 = arith.constant 0 : index
    %0 = vector.load %arg1[%c0, %c0_0, %c0_1] : memref<1x4x256xf32, #tpu.memory_space<vmem>>, vector<1x1x256xf32>
    %1 = vector.shape_cast %0 : vector<1x1x256xf32> to vector<1x256xf32>
    %c0_2 = arith.constant 0 : index
    %c1 = arith.constant 1 : index
    %c0_3 = arith.constant 0 : index
    %2 = vector.load %arg1[%c0_2, %c1, %c0_3] : memref<1x4x256xf32, #tpu.memory_space<vmem>>, vector<1x1x256xf32>
    %3 = vector.shape_cast %2 : vector<1x1x256xf32> to vector<1x256xf32>
    %4 = arith.addf %1, %3 : vector<1x256xf32>
    %5 = arith.maximumf %1, %3 : vector<1x256xf32>
    %c0_4 = arith.constant 0 : index
    %c2 = arith.constant 2 : index
    %c0_5 = arith.constant 0 : index
    %6 = vector.load %arg1[%c0_4, %c2, %c0_5] : memref<1x4x256xf32, #tpu.memory_space<vmem>>, vector<1x1x256xf32>
    %7 = vector.shape_cast %6 : vector<1x1x256xf32> to vector<1x256xf32>
    %8 = arith.addf %4, %7 : vector<1x256xf32>
    %9 = arith.maximumf %5, %7 : vector<1x256xf32>
    %c0_6 = arith.constant 0 : index
    %c3 = arith.constant 3 : index
    %c0_7 = arith.constant 0 : index
    %10 = vector.load %arg1[%c0_6, %c3, %c0_7] : memref<1x4x256xf32, #tpu.memory_space<vmem>>, vector<1x1x256xf32>
    %11 = vector.shape_cast %10 : vector<1x1x256xf32> to vector<1x256xf32>
    %12 = arith.addf %8, %11 : vector<1x256xf32>
    %13 = arith.maximumf %9, %11 : vector<1x256xf32>
    %c0_8 = arith.constant 0 : index
    %14 = memref.load %arg2[%c0_8] : memref<18xf32, #tpu.memory_space<smem>>
    %15 = vector.broadcast %14 : f32 to vector<1x256xf32>
    %16 = arith.mulf %15, %12 : vector<1x256xf32>
    %c9 = arith.constant 9 : index
    %17 = memref.load %arg2[%c9] : memref<18xf32, #tpu.memory_space<smem>>
    %18 = vector.broadcast %17 : f32 to vector<1x256xf32>
    %19 = arith.mulf %18, %13 : vector<1x256xf32>
    %20 = arith.addf %16, %19 : vector<1x256xf32>
    %c17_i32 = arith.constant 17 : i32
    %21 = tpu.dynamic_rotate %20 by %c17_i32 dim 1 : vector<1x256xf32>, i32 -> vector<1x256xf32>
    %c0_9 = arith.constant 0 : index
    %c0_10 = arith.constant 0 : index
    %22 = vector.load %arg3[%c0_9, %c0_10] : memref<9x256xf32, #tpu.memory_space<vmem>>, vector<1x256xf32>
    %23 = arith.mulf %21, %22 : vector<1x256xf32>
    %c1_11 = arith.constant 1 : index
    %24 = memref.load %arg2[%c1_11] : memref<18xf32, #tpu.memory_space<smem>>
    %25 = vector.broadcast %24 : f32 to vector<1x256xf32>
    %26 = arith.mulf %25, %12 : vector<1x256xf32>
    %c10 = arith.constant 10 : index
    %27 = memref.load %arg2[%c10] : memref<18xf32, #tpu.memory_space<smem>>
    %28 = vector.broadcast %27 : f32 to vector<1x256xf32>
    %29 = arith.mulf %28, %13 : vector<1x256xf32>
    %30 = arith.addf %26, %29 : vector<1x256xf32>
    %c16_i32 = arith.constant 16 : i32
    %31 = tpu.dynamic_rotate %30 by %c16_i32 dim 1 : vector<1x256xf32>, i32 -> vector<1x256xf32>
    %c1_12 = arith.constant 1 : index
    %c0_13 = arith.constant 0 : index
    %32 = vector.load %arg3[%c1_12, %c0_13] : memref<9x256xf32, #tpu.memory_space<vmem>>, vector<1x256xf32>
    %33 = arith.mulf %31, %32 : vector<1x256xf32>
    %34 = arith.addf %23, %33 : vector<1x256xf32>
    %c2_14 = arith.constant 2 : index
    %35 = memref.load %arg2[%c2_14] : memref<18xf32, #tpu.memory_space<smem>>
    %36 = vector.broadcast %35 : f32 to vector<1x256xf32>
    %37 = arith.mulf %36, %12 : vector<1x256xf32>
    %c11 = arith.constant 11 : index
    %38 = memref.load %arg2[%c11] : memref<18xf32, #tpu.memory_space<smem>>
    %39 = vector.broadcast %38 : f32 to vector<1x256xf32>
    %40 = arith.mulf %39, %13 : vector<1x256xf32>
    %41 = arith.addf %37, %40 : vector<1x256xf32>
    %c15_i32 = arith.constant 15 : i32
    %42 = tpu.dynamic_rotate %41 by %c15_i32 dim 1 : vector<1x256xf32>, i32 -> vector<1x256xf32>
    %c2_15 = arith.constant 2 : index
    %c0_16 = arith.constant 0 : index
    %43 = vector.load %arg3[%c2_15, %c0_16] : memref<9x256xf32, #tpu.memory_space<vmem>>, vector<1x256xf32>
    %44 = arith.mulf %42, %43 : vector<1x256xf32>
    %45 = arith.addf %34, %44 : vector<1x256xf32>
    %c3_17 = arith.constant 3 : index
    %46 = memref.load %arg2[%c3_17] : memref<18xf32, #tpu.memory_space<smem>>
    %47 = vector.broadcast %46 : f32 to vector<1x256xf32>
    %48 = arith.mulf %47, %12 : vector<1x256xf32>
    %c12 = arith.constant 12 : index
    %49 = memref.load %arg2[%c12] : memref<18xf32, #tpu.memory_space<smem>>
    %50 = vector.broadcast %49 : f32 to vector<1x256xf32>
    %51 = arith.mulf %50, %13 : vector<1x256xf32>
    %52 = arith.addf %48, %51 : vector<1x256xf32>
    %c1_i32 = arith.constant 1 : i32
    %53 = tpu.dynamic_rotate %52 by %c1_i32 dim 1 : vector<1x256xf32>, i32 -> vector<1x256xf32>
    %c3_18 = arith.constant 3 : index
    %c0_19 = arith.constant 0 : index
    %54 = vector.load %arg3[%c3_18, %c0_19] : memref<9x256xf32, #tpu.memory_space<vmem>>, vector<1x256xf32>
    %55 = arith.mulf %53, %54 : vector<1x256xf32>
    %56 = arith.addf %45, %55 : vector<1x256xf32>
    %c4 = arith.constant 4 : index
    %57 = memref.load %arg2[%c4] : memref<18xf32, #tpu.memory_space<smem>>
    %58 = vector.broadcast %57 : f32 to vector<1x256xf32>
    %59 = arith.mulf %58, %12 : vector<1x256xf32>
    %c13 = arith.constant 13 : index
    %60 = memref.load %arg2[%c13] : memref<18xf32, #tpu.memory_space<smem>>
    %61 = vector.broadcast %60 : f32 to vector<1x256xf32>
    %62 = arith.mulf %61, %13 : vector<1x256xf32>
    %63 = arith.addf %59, %62 : vector<1x256xf32>
    %64 = arith.addf %56, %63 : vector<1x256xf32>
    %c5 = arith.constant 5 : index
    %65 = memref.load %arg2[%c5] : memref<18xf32, #tpu.memory_space<smem>>
    %66 = vector.broadcast %65 : f32 to vector<1x256xf32>
    %67 = arith.mulf %66, %12 : vector<1x256xf32>
    %c14 = arith.constant 14 : index
    %68 = memref.load %arg2[%c14] : memref<18xf32, #tpu.memory_space<smem>>
    %69 = vector.broadcast %68 : f32 to vector<1x256xf32>
    %70 = arith.mulf %69, %13 : vector<1x256xf32>
    %71 = arith.addf %67, %70 : vector<1x256xf32>
    %c255_i32 = arith.constant 255 : i32
    %72 = tpu.dynamic_rotate %71 by %c255_i32 dim 1 : vector<1x256xf32>, i32 -> vector<1x256xf32>
    %c5_20 = arith.constant 5 : index
    %c0_21 = arith.constant 0 : index
    %73 = vector.load %arg3[%c5_20, %c0_21] : memref<9x256xf32, #tpu.memory_space<vmem>>, vector<1x256xf32>
    %74 = arith.mulf %72, %73 : vector<1x256xf32>
    %75 = arith.addf %64, %74 : vector<1x256xf32>
    %c6 = arith.constant 6 : index
    %76 = memref.load %arg2[%c6] : memref<18xf32, #tpu.memory_space<smem>>
    %77 = vector.broadcast %76 : f32 to vector<1x256xf32>
    %78 = arith.mulf %77, %12 : vector<1x256xf32>
    %c15 = arith.constant 15 : index
    %79 = memref.load %arg2[%c15] : memref<18xf32, #tpu.memory_space<smem>>
    %80 = vector.broadcast %79 : f32 to vector<1x256xf32>
    %81 = arith.mulf %80, %13 : vector<1x256xf32>
    %82 = arith.addf %78, %81 : vector<1x256xf32>
    %c241_i32 = arith.constant 241 : i32
    %83 = tpu.dynamic_rotate %82 by %c241_i32 dim 1 : vector<1x256xf32>, i32 -> vector<1x256xf32>
    %c6_22 = arith.constant 6 : index
    %c0_23 = arith.constant 0 : index
    %84 = vector.load %arg3[%c6_22, %c0_23] : memref<9x256xf32, #tpu.memory_space<vmem>>, vector<1x256xf32>
    %85 = arith.mulf %83, %84 : vector<1x256xf32>
    %86 = arith.addf %75, %85 : vector<1x256xf32>
    %c7 = arith.constant 7 : index
    %87 = memref.load %arg2[%c7] : memref<18xf32, #tpu.memory_space<smem>>
    %88 = vector.broadcast %87 : f32 to vector<1x256xf32>
    %89 = arith.mulf %88, %12 : vector<1x256xf32>
    %c16 = arith.constant 16 : index
    %90 = memref.load %arg2[%c16] : memref<18xf32, #tpu.memory_space<smem>>
    %91 = vector.broadcast %90 : f32 to vector<1x256xf32>
    %92 = arith.mulf %91, %13 : vector<1x256xf32>
    %93 = arith.addf %89, %92 : vector<1x256xf32>
    %c240_i32 = arith.constant 240 : i32
    %94 = tpu.dynamic_rotate %93 by %c240_i32 dim 1 : vector<1x256xf32>, i32 -> vector<1x256xf32>
    %c7_24 = arith.constant 7 : index
    %c0_25 = arith.constant 0 : index
    %95 = vector.load %arg3[%c7_24, %c0_25] : memref<9x256xf32, #tpu.memory_space<vmem>>, vector<1x256xf32>
    %96 = arith.mulf %94, %95 : vector<1x256xf32>
    %97 = arith.addf %86, %96 : vector<1x256xf32>
    %c8 = arith.constant 8 : index
    %98 = memref.load %arg2[%c8] : memref<18xf32, #tpu.memory_space<smem>>
    %99 = vector.broadcast %98 : f32 to vector<1x256xf32>
    %100 = arith.mulf %99, %12 : vector<1x256xf32>
    %c17 = arith.constant 17 : index
    %101 = memref.load %arg2[%c17] : memref<18xf32, #tpu.memory_space<smem>>
    %102 = vector.broadcast %101 : f32 to vector<1x256xf32>
    %103 = arith.mulf %102, %13 : vector<1x256xf32>
    %104 = arith.addf %100, %103 : vector<1x256xf32>
    %c239_i32 = arith.constant 239 : i32
    %105 = tpu.dynamic_rotate %104 by %c239_i32 dim 1 : vector<1x256xf32>, i32 -> vector<1x256xf32>
    %c8_26 = arith.constant 8 : index
    %c0_27 = arith.constant 0 : index
    %106 = vector.load %arg3[%c8_26, %c0_27] : memref<9x256xf32, #tpu.memory_space<vmem>>, vector<1x256xf32>
    %107 = arith.mulf %105, %106 : vector<1x256xf32>
    %108 = arith.addf %97, %107 : vector<1x256xf32>
    %109 = arith.negf %108 : vector<1x256xf32>
    %110 = math.exp %109 : vector<1x256xf32>
    %cst = arith.constant 1.000000e+00 : f32
    %111 = vector.broadcast %cst : f32 to vector<1x256xf32>
    %112 = arith.addf %111, %110 : vector<1x256xf32>
    %113 = arith.divf %111, %112 : vector<1x256xf32>
    %c0_28 = arith.constant 0 : index
    %c0_29 = arith.constant 0 : index
    %c0_30 = arith.constant 0 : index
    %114 = vector.load %arg4[%c0_28, %c0_29, %c0_30] : memref<1x1x256xf32, #tpu.memory_space<vmem>>, vector<1x1x256xf32>
    %115 = vector.shape_cast %114 : vector<1x1x256xf32> to vector<1x256xf32>
    %116 = vector.shape_cast %113 : vector<1x256xf32> to vector<1x1x256xf32>
    tpu.vector_store %arg4[%c0_28, %c0_29, %c0_30], %116 {strides = array<i32>} : memref<1x1x256xf32, #tpu.memory_space<vmem>>, vector<1x1x256xf32>,
    return
  }
  func.func @transform_0(%arg0: i32) -> (i32, i32, i32) {
    %c0_i32 = arith.constant 0 : i32
    %c0_i32_0 = arith.constant 0 : i32
    %c0_i32_1 = arith.constant 0 : i32
    return %arg0, %c0_i32, %c0_i32_0 : i32, i32, i32
  }
  func.func @transform_1(%arg0: i32) -> i32 {
    %c0_i32 = arith.constant 0 : i32
    %c0_i32_0 = arith.constant 0 : i32
    return %c0_i32 : i32
  }
  func.func @transform_2(%arg0: i32) -> (i32, i32) {
    %c0_i32 = arith.constant 0 : i32
    %c0_i32_0 = arith.constant 0 : i32
    %c0_i32_1 = arith.constant 0 : i32
    return %c0_i32, %c0_i32_0 : i32, i32
  }
  func.func @transform_3(%arg0: i32) -> (i32, i32, i32) {
    %c0_i32 = arith.constant 0 : i32
    %c0_i32_0 = arith.constant 0 : i32
    %c0_i32_1 = arith.constant 0 : i32
    return %arg0, %c0_i32, %c0_i32_0 : i32, i32, i32
  }
}

</mosaic_0001>

<llo_original>
// kernel: tpu_custom_call.1
$region0: #{tpu_custom_call.1}
  #allocation0 [shape = 'u32[]', space=smem, size = 0x4, offset = 0x4, fixed_abs, tag = 'smem constant byte address 0x4 - core index']
  #allocation1 [shape = 'u32[144,128]{1,0:T(1,128)}', space=vmem, size = 0x12000, scoped, tag = 'internal scratch']
  %s0 = inlined_call_operand.hbm [shape: f32[2,4,256], index: 0, kind: input, shape index: {}]
  %s1 = inlined_call_operand.vmem [shape: f32[18], index: 1, kind: input, shape index: {}]
  %s2 = inlined_call_operand.hbm [shape: f32[9,256], index: 2, kind: input, shape index: {}]
  %s3 = inlined_call_operand.hbm [shape: f32[2,1,256], index: 3, kind: output, shape index: {}]
  %s4 = sld [smem:[#allocation0]]
  $region57: #{tpu_custom_call.1} parent=0
    _
  %s6 = ssub.s32 1, %s4
  %s7 = scalar_select 0, %s6, %s4
  $region1: #{tpu_custom_call.1} parent=0
    #allocation2 [shape = 'u8[8192]{0}', space=vmem, size = 0x2000, scoped, tag = 'input window, operand 0']
    #allocation3 [shape = 's32[2]{0}', space=sflag, size = 0x8, scoped, tag = 'scoped memory for tpu_custom_call.1']
    #allocation4 [shape = 's32[2]{0}', space=sflag, size = 0x8, scoped, tag = 'scoped memory for tpu_custom_call.1']
    #allocation5 [shape = 's32[2]{0}', space=sflag, size = 0x8, scoped, tag = 'scoped memory for tpu_custom_call.1']
    #allocation6 [shape = 'u8[512]{0}', space=smem, size = 0x200, scoped, tag = 'input window, operand 1, single buffered']
    #allocation7 [shape = 'u8[16384]{0}', space=vmem, size = 0x4000, scoped, tag = 'input window, operand 2, single buffered']
    #allocation8 [shape = 's32[1]{0}', space=sflag, size = 0x4, scoped, tag = 'scoped memory for tpu_custom_call.1']
    #allocation9 [shape = 'u8[2048]{0}', space=vmem, size = 0x800, scoped, tag = 'output window, operand 0']
    %8 = vsyncpa [#allocation3], 0
    %s9 = scalar_lea.sflag [#allocation3], 1
    %10 = vsyncpa %s9, 0
    %11 = vsyncpa [#allocation5], 0
    %12 = vsyncpa [#allocation8], 0
    %13 = vsyncpa [#allocation4], 0
    %s14 = scalar_lea.sflag [#allocation4], 1
    %15 = vsyncpa %s14, 0
    loop: start=0, step=1, limit=4
    $region2: #{tpu_custom_call.1} parent=1 // loop_pre_header
      _
    $region3: #{tpu_custom_call.1} parent=1 // loop_header
      %s17 = sphi 0, %s21
      %p18 = scmp.ge.s32.totalorder %s17, 4
      %s27 = sphi 0, %s29
      %s30 = sphi 0, %s27
      %s31 = sphi 0, %s30
      %s47 = sphi 0, %s31
      %s51 = sphi 0, %s51
      %s53 = sphi 0, %s51
      %s54 = sphi 0, %s53
      %s68 = sphi 0, %s54
      %s72 = sphi 0, %s72
      %s74 = sphi 0, %s72
      %s75 = sphi 0, %s74
      %s89 = sphi 0, %s75
      %s95 = sphi 0, %s97
      %s98 = sphi 0, %s95
      %s99 = sphi 0, %s98
      %s115 = sphi 0, %s99
    $region4: #{tpu_custom_call.1} parent=1 // loop_header_branch
      %20 = sbr.rel (%p18) target = $region8
    $region5: #{tpu_custom_call.1} parent=1 // loop_body
      %s22 = ssub.s32 %s17, 1
      %s23 = ssub.s32 %s17, 2
      %s24 = sadd.s32 %s17, 1
      %s25 = ssub.s32 %s17, %s24
      %p26 = scmp.eq.s32.totalorder %s25, 0
      %s28 = sadd.s32 %s27, 1
      %s29 = scalar_select %p26, %s27, %s28
      %p32 = pneg %p26
      %p33 = scmp.eq.s32.totalorder %s17, 1
      %p34 = por %p32, %p33
      %p35 = scmp.ne.s32.totalorder %s27, %s30
      %p36 = scmp.eq.s32.totalorder %s17, 0
      %p37 = por %p35, %p36
      %p38 = scmp.ne.s32.totalorder %s27, %s30
      %p39 = scmp.eq.s32.totalorder %s22, 1
      %p40 = por %p38, %p39
      %p41 = scmp.ne.s32.totalorder %s30, %s31
      %p42 = scmp.eq.s32.totalorder %s22, 0
      %p43 = por %p41, %p42
      %p44 = scmp.ne.s32.totalorder %s30, %s31
      %p45 = scmp.eq.s32.totalorder %s23, 1
      %p46 = por %p44, %p45
      %p48 = scmp.ne.s32.totalorder %s31, %s47
      %p49 = scmp.eq.s32.totalorder %s23, 0
      %p50 = por %p48, %p49
      %s52 = sadd.s32 %s51, 1
      %p55 = scmp.eq.s32.totalorder %s17, 1
      %p56 = scmp.ne.s32.totalorder %s51, %s53
      %p57 = scmp.eq.s32.totalorder %s17, 0
      %p58 = por %p56, %p57
      %p59 = scmp.ne.s32.totalorder %s51, %s53
      %p60 = scmp.eq.s32.totalorder %s22, 1
      %p61 = por %p59, %p60
      %p62 = scmp.ne.s32.totalorder %s53, %s54
      %p63 = scmp.eq.s32.totalorder %s22, 0
      %p64 = por %p62, %p63
      %p65 = scmp.ne.s32.totalorder %s53, %s54
      %p66 = scmp.eq.s32.totalorder %s23, 1
      %p67 = por %p65, %p66
      %p69 = scmp.ne.s32.totalorder %s54, %s68
      %p70 = scmp.eq.s32.totalorder %s23, 0
      %p71 = por %p69, %p70
      %s73 = sadd.s32 %s72, 1
      %p76 = scmp.eq.s32.totalorder %s17, 1
      %p77 = scmp.ne.s32.totalorder %s72, %s74
      %p78 = scmp.eq.s32.totalorder %s17, 0
      %p79 = por %p77, %p78
      %p80 = scmp.ne.s32.totalorder %s72, %s74
      %p81 = scmp.eq.s32.totalorder %s22, 1
      %p82 = por %p80, %p81
      %p83 = scmp.ne.s32.totalorder %s74, %s75
      %p84 = scmp.eq.s32.totalorder %s22, 0
      %p85 = por %p83, %p84
      %p86 = scmp.ne.s32.totalorder %s74, %s75
      %p87 = scmp.eq.s32.totalorder %s23, 1
      %p88 = por %p86, %p87
      %p90 = scmp.ne.s32.totalorder %s75, %s89
      %p91 = scmp.eq.s32.totalorder %s23, 0
      %p92 = por %p90, %p91
      %s93 = ssub.s32 %s17, %s24
      %p94 = scmp.eq.s32.totalorder %s93, 0
      %s96 = sadd.s32 %s95, 1
      %s97 = scalar_select %p94, %s95, %s96
      %p100 = pneg %p94
      %p101 = scmp.eq.s32.totalorder %s17, 1
      %p102 = por %p100, %p101
      %p103 = scmp.ne.s32.totalorder %s95, %s98
      %p104 = scmp.eq.s32.totalorder %s17, 0
      %p105 = por %p103, %p104
      %p106 = scmp.ne.s32.totalorder %s95, %s98
      %p107 = scmp.eq.s32.totalorder %s22, 1
      %p108 = por %p106, %p107
      %p109 = scmp.ne.s32.totalorder %s98, %s99
      %p110 = scmp.eq.s32.totalorder %s22, 0
      %p111 = por %p109, %p110
      %p112 = scmp.ne.s32.totalorder %s98, %s99
      %p113 = scmp.eq.s32.totalorder %s23, 1
      %p114 = por %p112, %p113
      %p116 = scmp.ne.s32.totalorder %s99, %s115
      %p117 = scmp.eq.s32.totalorder %s23, 0
      %p118 = por %p116, %p117
      %p119 = scmp.le.s32.totalorder 1, %s17
      %p120 = scmp.lt.s32.totalorder %s17, 3
      %p121 = pnand %p119, %p120
      %p122 = pneg %p121
      // Predicated region
      $region9: #{tpu_custom_call.1} parent=5 // pred_check
        _
      $region10: #{tpu_custom_call.1} parent=5 // pred_check_branch
        %124 = sbr.rel (%p121) target = $region12
      $region11: #{tpu_custom_call.1} parent=5 // pred_region
        %s125 = ssub.s32 %s17, 1
        // Predicated region
        $region13: #{tpu_custom_call.1} parent=11 // pred_check
          %p126 = pneg %p64
        $region14: #{tpu_custom_call.1} parent=11 // pred_check_branch
          %128 = sbr.rel (%p126) target = $region16
        $region15: #{tpu_custom_call.1} parent=11 // pred_region
          %s130 = ssub.s32 16, 16
          %131 = vsyncadd [#allocation5], %s130
          %s133 = sshll.u32 %s1, 4
          %s134 = int_to_ptr.vmem [resolvable:$true] %s133
          %136 = dma.vmem_to_smem %s134, 16, [#allocation6], [#allocation5]
        $region16: #{tpu_custom_call.1} parent=11 // pred_fallthru
          _
        // Predicated region
        $region17: #{tpu_custom_call.1} parent=11 // pred_check
          %p137 = pneg %p85
        $region18: #{tpu_custom_call.1} parent=11 // pred_check_branch
          %139 = sbr.rel (%p137) target = $region20
        $region19: #{tpu_custom_call.1} parent=11 // pred_region
          %s141 = ssub.s32 512, 512
          %142 = vsyncadd [#allocation8], %s141
          %s143 = sshll.u32 [#allocation7], 4
          %s144 = int_to_ptr.vmem [resolvable:$true] %s143
          %149 = dma.hbm_to_vmem [thread:$0]  %s2, 512, %s144, [#allocation8], 256, 256, 16
        $region20: #{tpu_custom_call.1} parent=11 // pred_fallthru
          _
      $region12: #{tpu_custom_call.1} parent=5 // pred_fallthru
        _
      %p150 = scmp.lt.s32.totalorder %s17, 2
      // Predicated region
      $region21: #{tpu_custom_call.1} parent=5 // pred_check
        %p151 = pneg %p150
      $region22: #{tpu_custom_call.1} parent=5 // pred_check_branch
        %153 = sbr.rel (%p151) target = $region24
      $region23: #{tpu_custom_call.1} parent=5 // pred_region
        // Predicated region
        $region25: #{tpu_custom_call.1} parent=23 // pred_check
          %p154 = pneg %p37
        $region26: #{tpu_custom_call.1} parent=23 // pred_check_branch
          %156 = sbr.rel (%p154) target = $region28
        $region27: #{tpu_custom_call.1} parent=23 // pred_region
          %s157 = sand.u32 %s27, 1
          %s158 = scalar_lea.sflag [#allocation3], %s157
          %s159 = sand.u32 %s27, 1
          %s160 = smul.addr %s159, 8
          %s161 = scalar_lea.vmem [#allocation2], %s160
          %s163 = ssub.s32 128, 128
          %164 = vsyncadd %s158, %s163
          %s165 = smul.addr %s17, 2
          %s166 = smul.addr %s165, 64
          %s167 = scalar_lea.hbm %s0, %s166
          %s169 = sshll.u32 %s161, 4
          %s170 = int_to_ptr.vmem [resolvable:$true] %s169
          %172 = dma.hbm_to_vmem [thread:$0]  %s167, 128, %s170, %s158
        $region28: #{tpu_custom_call.1} parent=23 // pred_fallthru
          _
      $region24: #{tpu_custom_call.1} parent=5 // pred_fallthru
        _
      %p173 = scmp.le.s32.totalorder 1, %s17
      %p174 = scmp.lt.s32.totalorder %s17, 3
      %p175 = pnand %p173, %p174
      %p176 = pneg %p175
      // Predicated region
      $region29: #{tpu_custom_call.1} parent=5 // pred_check
        _
      $region30: #{tpu_custom_call.1} parent=5 // pred_check_branch
        %178 = sbr.rel (%p175) target = $region32
      $region31: #{tpu_custom_call.1} parent=5 // pred_region
        %s179 = ssub.s32 %s17, 1
        %s180 = sand.u32 %s30, 1
        %s181 = scalar_lea.sflag [#allocation3], %s180
        %s182 = sand.u32 %s30, 1
        %s183 = smul.addr %s182, 8
        %s184 = scalar_lea.vmem [#allocation2], %s183
        // Predicated region
        $region33: #{tpu_custom_call.1} parent=31 // pred_check
          %p185 = pneg %p43
        $region34: #{tpu_custom_call.1} parent=31 // pred_check_branch
          %187 = sbr.rel (%p185) target = $region36
        $region35: #{tpu_custom_call.1} parent=31 // pred_region
          %188 = dma.done %s181, 128
        $region36: #{tpu_custom_call.1} parent=31 // pred_fallthru
          _
        // Predicated region
        $region37: #{tpu_custom_call.1} parent=31 // pred_check
          %p189 = pneg %p64
        $region38: #{tpu_custom_call.1} parent=31 // pred_check_branch
          %191 = sbr.rel (%p189) target = $region40
        $region39: #{tpu_custom_call.1} parent=31 // pred_region
          %192 = dma.done [#allocation5], 16
        $region40: #{tpu_custom_call.1} parent=31 // pred_fallthru
          _
        // Predicated region
        $region41: #{tpu_custom_call.1} parent=31 // pred_check
          %p193 = pneg %p85
        $region42: #{tpu_custom_call.1} parent=31 // pred_check_branch
          %195 = sbr.rel (%p193) target = $region44
        $region43: #{tpu_custom_call.1} parent=31 // pred_region
          %196 = dma.done [#allocation8], 512
        $region44: #{tpu_custom_call.1} parent=31 // pred_fallthru
          _
        %197 = sfence
        %s198 = sand.u32 %s30, 1
        %s199 = scalar_lea.sflag [#allocation3], %s198
        %s200 = sand.u32 %s30, 1
        %s201 = smul.addr %s200, 8
        %s202 = scalar_lea.vmem [#allocation2], %s201
        %p203 = pneg %p43
        %p204 = pneg %p40
        %p205 = pneg %p64
        %p206 = pneg %p61
        %p207 = pneg %p85
        %p208 = pneg %p82
        %p209 = pneg %p111
        %p210 = pneg %p108
        %s211 = sand.u32 %s98, 1
        %s212 = scalar_lea.sflag [#allocation4], %s211
        %s213 = sand.u32 %s98, 1
        %s214 = smul.addr %s213, 2
        %s215 = scalar_lea.vmem [#allocation9], %s214
        %v216 = vld [vmem:[%s184] ss:$4 sm:$0x3]
        %s217 = scalar_lea.vmem %s184, 1 [#allocation2]
        %v218 = vld [vmem:[%s217] ss:$4 sm:$0x3]
        %v219 = vadd.f32 %v216, %v218
        %v220 = vmax.f32 %v216, %v218
        %s221 = scalar_lea.vmem %s184, 2 [#allocation2]
        %v222 = vld [vmem:[%s221] ss:$4 sm:$0x3]
        %v223 = vadd.f32 %v219, %v222
        %v224 = vmax.f32 %v220, %v222
        %s225 = scalar_lea.vmem %s184, 3 [#allocation2]
        %v226 = vld [vmem:[%s225] ss:$4 sm:$0x3]
        %v227 = vadd.f32 %v223, %v226
        %v228 = vmax.f32 %v224, %v226
        %s229 = sld [smem:[#allocation6]]
        %v230 = vstv %s229
        %v231 = vmul.f32 %v230, %v227
        %s232 = sld [smem:[#allocation6 + $0x9]]
        %v233 = vstv %s232
        %v234 = vmul.f32 %v233, %v228
        %v235 = vadd.f32 %v231, %v234
        %v237 = vlaneseq
        %v238 = vshrl.u32 %v237, 7
        %v239 = vsub.s32 0, %v238
        %v240 = vrot.slane %v235, %v239
        %v241 = vlaneseq
        %v242 = vshrl.u32 %v241, 7
        %v243 = vsub.s32 1, %v242
        %v244 = vrot.slane %v235, %v243
        %247 = vrot.lane.b32.xlu0 %v240, 17
        %v248 = vpop.permute.xlu0 %247
        %249 = vrot.lane.b32.xlu0 %v244, 17
        %v250 = vpop.permute.xlu0 %249
        %v251 = vlaneseq
        %v252 = vand.u32 %v251, 127
        %vm253 = vcmp.lt.s32.totalorder %v252, 17
        %v254 = vsel %vm253, %v248, %v250
        %v255 = vsel %vm253, %v250, %v248
        %v256 = vld [vmem:[#allocation7] ss:$8 sm:$0x3]
        %v258 = vlaneseq
        %v259 = vshrl.u32 %v258, 7
        %v260 = vsub.s32 0, %v259
        %v261 = vrot.slane %v256, %v260
        %v262 = vlaneseq
        %v263 = vshrl.u32 %v262, 7
        %v264 = vsub.s32 1, %v263
        %v265 = vrot.slane %v256, %v264
        %v268 = vmul.f32 %v255, %v261
        %v269 = vmul.f32 %v254, %v265
        %s270 = sld [smem:[#allocation6 + $0x1]]
        %v271 = vstv %s270
        %v272 = vmul.f32 %v271, %v227
        %s273 = sld [smem:[#allocation6 + $0xa]]
        %v274 = vstv %s273
        %v275 = vmul.f32 %v274, %v228
        %v276 = vadd.f32 %v272, %v275
        %v278 = vlaneseq
        %v279 = vshrl.u32 %v278, 7
        %v280 = vsub.s32 0, %v279
        %v281 = vrot.slane %v276, %v280
        %v282 = vlaneseq
        %v283 = vshrl.u32 %v282, 7
        %v284 = vsub.s32 1, %v283
        %v285 = vrot.slane %v276, %v284
        %288 = vrot.lane.b32.xlu0 %v281, 16
        %v289 = vpop.permute.xlu0 %288
        %290 = vrot.lane.b32.xlu0 %v285, 16
        %v291 = vpop.permute.xlu0 %290
        %vm292 = vcmp.lt.s32.totalorder %v252, 16
        %v293 = vsel %vm292, %v289, %v291
        %v294 = vsel %vm292, %v291, %v289
        %s295 = scalar_lea.vmem [#allocation7], 1
        %v296 = vld [vmem:[%s295] ss:$8 sm:$0x3]
        %v298 = vlaneseq
        %v299 = vshrl.u32 %v298, 7
        %v300 = vsub.s32 0, %v299
        %v301 = vrot.slane %v296, %v300
        %v302 = vlaneseq
        %v303 = vshrl.u32 %v302, 7
        %v304 = vsub.s32 1, %v303
        %v305 = vrot.slane %v296, %v304
        %v308 = vmul.f32 %v294, %v301
        %v309 = vmul.f32 %v293, %v305
        %v310 = vadd.f32 %v268, %v308
        %v311 = vadd.f32 %v269, %v309
        %s312 = sld [smem:[#allocation6 + $0x2]]
        %v313 = vstv %s312
        %v314 = vmul.f32 %v313, %v227
        %s315 = sld [smem:[#allocation6 + $0xb]]
        %v316 = vstv %s315
        %v317 = vmul.f32 %v316, %v228
        %v318 = vadd.f32 %v314, %v317
        %v320 = vlaneseq
        %v321 = vshrl.u32 %v320, 7
        %v322 = vsub.s32 0, %v321
        %v323 = vrot.slane %v318, %v322
        %v324 = vlaneseq
        %v325 = vshrl.u32 %v324, 7
        %v326 = vsub.s32 1, %v325
        %v327 = vrot.slane %v318, %v326
        %330 = vrot.lane.b32.xlu0 %v323, 15
        %v331 = vpop.permute.xlu0 %330
        %332 = vrot.lane.b32.xlu0 %v327, 15
        %v333 = vpop.permute.xlu0 %332
        %vm334 = vcmp.lt.s32.totalorder %v252, 15
        %v335 = vsel %vm334, %v331, %v333
        %v336 = vsel %vm334, %v333, %v331
        %s337 = scalar_lea.vmem [#allocation7], 2
        %v338 = vld [vmem:[%s337] ss:$8 sm:$0x3]
        %v340 = vlaneseq
        %v341 = vshrl.u32 %v340, 7
        %v342 = vsub.s32 0, %v341
        %v343 = vrot.slane %v338, %v342
        %v344 = vlaneseq
        %v345 = vshrl.u32 %v344, 7
        %v346 = vsub.s32 1, %v345
        %v347 = vrot.slane %v338, %v346
        %v350 = vmul.f32 %v336, %v343
        %v351 = vmul.f32 %v335, %v347
        %v352 = vadd.f32 %v310, %v350
        %v353 = vadd.f32 %v311, %v351
        %s354 = sld [smem:[#allocation6 + $0x3]]
        %v355 = vstv %s354
        %v356 = vmul.f32 %v355, %v227
        %s357 = sld [smem:[#allocation6 + $0xc]]
        %v358 = vstv %s357
        %v359 = vmul.f32 %v358, %v228
        %v360 = vadd.f32 %v356, %v359
        %v362 = vlaneseq
        %v363 = vshrl.u32 %v362, 7
        %v364 = vsub.s32 0, %v363
        %v365 = vrot.slane %v360, %v364
        %v366 = vlaneseq
        %v367 = vshrl.u32 %v366, 7
        %v368 = vsub.s32 1, %v367
        %v369 = vrot.slane %v360, %v368
        %372 = vrot.lane.b32.xlu0 %v365, 1
        %v373 = vpop.permute.xlu0 %372
        %374 = vrot.lane.b32.xlu0 %v369, 1
        %v375 = vpop.permute.xlu0 %374
        %vm376 = vcmp.lt.s32.totalorder %v252, 1
        %v377 = vsel %vm376, %v373, %v375
        %v378 = vsel %vm376, %v375, %v373
        %s379 = scalar_lea.vmem [#allocation7], 3
        %v380 = vld [vmem:[%s379] ss:$8 sm:$0x3]
        %v382 = vlaneseq
        %v383 = vshrl.u32 %v382, 7
        %v384 = vsub.s32 0, %v383
        %v385 = vrot.slane %v380, %v384
        %v386 = vlaneseq
        %v387 = vshrl.u32 %v386, 7
        %v388 = vsub.s32 1, %v387
        %v389 = vrot.slane %v380, %v388
        %v392 = vmul.f32 %v378, %v385
        %v393 = vmul.f32 %v377, %v389
        %v394 = vadd.f32 %v352, %v392
        %v395 = vadd.f32 %v353, %v393
        %s396 = sld [smem:[#allocation6 + $0x4]]
        %v397 = vstv %s396
        %v398 = vmul.f32 %v397, %v227
        %s399 = sld [smem:[#allocation6 + $0xd]]
        %v400 = vstv %s399
        %v401 = vmul.f32 %v400, %v228
        %v402 = vadd.f32 %v398, %v401
        %v404 = vlaneseq
        %v405 = vshrl.u32 %v404, 7
        %v406 = vsub.s32 0, %v405
        %v407 = vrot.slane %v402, %v406
        %v408 = vlaneseq
        %v409 = vshrl.u32 %v408, 7
        %v410 = vsub.s32 1, %v409
        %v411 = vrot.slane %v402, %v410
        %v414 = vadd.f32 %v394, %v407
        %v415 = vadd.f32 %v395, %v411
        %s416 = sld [smem:[#allocation6 + $0x5]]
        %v417 = vstv %s416
        %v418 = vmul.f32 %v417, %v227
        %s419 = sld [smem:[#allocation6 + $0xe]]
        %v420 = vstv %s419
        %v421 = vmul.f32 %v420, %v228
        %v422 = vadd.f32 %v418, %v421
        %v424 = vlaneseq
        %v425 = vshrl.u32 %v424, 7
        %v426 = vsub.s32 0, %v425
        %v427 = vrot.slane %v422, %v426
        %v428 = vlaneseq
        %v429 = vshrl.u32 %v428, 7
        %v430 = vsub.s32 1, %v429
        %v431 = vrot.slane %v422, %v430
        %434 = vrot.lane.b32.xlu0 %v427, 127
        %v435 = vpop.permute.xlu0 %434
        %436 = vrot.lane.b32.xlu0 %v431, 127
        %v437 = vpop.permute.xlu0 %436
        %vm438 = vcmp.lt.s32.totalorder %v252, 127
        %v439 = vsel %vm438, %v435, %v437
        %v440 = vsel %vm438, %v437, %v435
        %s441 = scalar_lea.vmem [#allocation7], 5
        %v442 = vld [vmem:[%s441] ss:$8 sm:$0x3]
        %v444 = vlaneseq
        %v445 = vshrl.u32 %v444, 7
        %v446 = vsub.s32 0, %v445
        %v447 = vrot.slane %v442, %v446
        %v448 = vlaneseq
        %v449 = vshrl.u32 %v448, 7
        %v450 = vsub.s32 1, %v449
        %v451 = vrot.slane %v442, %v450
        %v454 = vmul.f32 %v439, %v447
        %v455 = vmul.f32 %v440, %v451
        %v456 = vadd.f32 %v414, %v454
        %v457 = vadd.f32 %v415, %v455
        %s458 = sld [smem:[#allocation6 + $0x6]]
        %v459 = vstv %s458
        %v460 = vmul.f32 %v459, %v227
        %s461 = sld [smem:[#allocation6 + $0xf]]
        %v462 = vstv %s461
        %v463 = vmul.f32 %v462, %v228
        %v464 = vadd.f32 %v460, %v463
        %v466 = vlaneseq
        %v467 = vshrl.u32 %v466, 7
        %v468 = vsub.s32 0, %v467
        %v469 = vrot.slane %v464, %v468
        %v470 = vlaneseq
        %v471 = vshrl.u32 %v470, 7
        %v472 = vsub.s32 1, %v471
        %v473 = vrot.slane %v464, %v472
        %476 = vrot.lane.b32.xlu0 %v469, 113
        %v477 = vpop.permute.xlu0 %476
        %478 = vrot.lane.b32.xlu0 %v473, 113
        %v479 = vpop.permute.xlu0 %478
        %vm480 = vcmp.lt.s32.totalorder %v252, 113
        %v481 = vsel %vm480, %v477, %v479
        %v482 = vsel %vm480, %v479, %v477
        %s483 = scalar_lea.vmem [#allocation7], 6
        %v484 = vld [vmem:[%s483] ss:$8 sm:$0x3]
        %v486 = vlaneseq
        %v487 = vshrl.u32 %v486, 7
        %v488 = vsub.s32 0, %v487
        %v489 = vrot.slane %v484, %v488
        %v490 = vlaneseq
        %v491 = vshrl.u32 %v490, 7
        %v492 = vsub.s32 1, %v491
        %v493 = vrot.slane %v484, %v492
        %v496 = vmul.f32 %v481, %v489
        %v497 = vmul.f32 %v482, %v493
        %v498 = vadd.f32 %v456, %v496
        %v499 = vadd.f32 %v457, %v497
        %s500 = sld [smem:[#allocation6 + $0x7]]
        %v501 = vstv %s500
        %v502 = vmul.f32 %v501, %v227
        %s503 = sld [smem:[#allocation6 + $0x10]]
        %v504 = vstv %s503
        %v505 = vmul.f32 %v504, %v228
        %v506 = vadd.f32 %v502, %v505
        %v508 = vlaneseq
        %v509 = vshrl.u32 %v508, 7
        %v510 = vsub.s32 0, %v509
        %v511 = vrot.slane %v506, %v510
        %v512 = vlaneseq
        %v513 = vshrl.u32 %v512, 7
        %v514 = vsub.s32 1, %v513
        %v515 = vrot.slane %v506, %v514
        %518 = vrot.lane.b32.xlu0 %v511, 112
        %v519 = vpop.permute.xlu0 %518
        %520 = vrot.lane.b32.xlu0 %v515, 112
        %v521 = vpop.permute.xlu0 %520
        %vm522 = vcmp.lt.s32.totalorder %v252, 112
        %v523 = vsel %vm522, %v519, %v521
        %v524 = vsel %vm522, %v521, %v519
        %s525 = scalar_lea.vmem [#allocation7], 7
        %v526 = vld [vmem:[%s525] ss:$8 sm:$0x3]
        %v528 = vlaneseq
        %v529 = vshrl.u32 %v528, 7
        %v530 = vsub.s32 0, %v529
        %v531 = vrot.slane %v526, %v530
        %v532 = vlaneseq
        %v533 = vshrl.u32 %v532, 7
        %v534 = vsub.s32 1, %v533
        %v535 = vrot.slane %v526, %v534
        %v538 = vmul.f32 %v523, %v531
        %v539 = vmul.f32 %v524, %v535
        %v540 = vadd.f32 %v498, %v538
        %v541 = vadd.f32 %v499, %v539
        %s542 = sld [smem:[#allocation6 + $0x8]]
        %v543 = vstv %s542
        %v544 = vmul.f32 %v543, %v227
        %s545 = sld [smem:[#allocation6 + $0x11]]
        %v546 = vstv %s545
        %v547 = vmul.f32 %v546, %v228
        %v548 = vadd.f32 %v544, %v547
        %v550 = vlaneseq
        %v551 = vshrl.u32 %v550, 7
        %v552 = vsub.s32 0, %v551
        %v553 = vrot.slane %v548, %v552
        %v554 = vlaneseq
        %v555 = vshrl.u32 %v554, 7
        %v556 = vsub.s32 1, %v555
        %v557 = vrot.slane %v548, %v556
        %560 = vrot.lane.b32.xlu0 %v553, 111
        %v561 = vpop.permute.xlu0 %560
        %562 = vrot.lane.b32.xlu0 %v557, 111
        %v563 = vpop.permute.xlu0 %562
        %vm564 = vcmp.lt.s32.totalorder %v252, 111
        %v565 = vsel %vm564, %v561, %v563
        %v566 = vsel %vm564, %v563, %v561
        %s567 = scalar_lea.vmem [#allocation7], 16
        %v568 = vld [vmem:[%s567] ss:$8 sm:$0x3]
        %v570 = vlaneseq
        %v571 = vshrl.u32 %v570, 7
        %v572 = vsub.s32 0, %v571
        %v573 = vrot.slane %v568, %v572
        %v574 = vlaneseq
        %v575 = vshrl.u32 %v574, 7
        %v576 = vsub.s32 1, %v575
        %v577 = vrot.slane %v568, %v576
        %v580 = vmul.f32 %v565, %v573
        %v581 = vmul.f32 %v566, %v577
        %v582 = vadd.f32 %v540, %v580
        %v583 = vadd.f32 %v541, %v581
        %v584 = vxor.u32 %v582, 2147483648
        %v585 = vxor.u32 %v583, 2147483648
        %v586 = vmul.f32 %v584, 1.442695
        %v587 = vpow.pop %v586
        %v588 = vmul.f32 %v585, 1.442695
        %v589 = vpow.pop %v588
        %v590 = vadd.f32 %v587, 1.0
        %v591 = vadd.f32 %v589, 1.0
        %v592 = vrcp.pop %v590
        %v593 = vmul.f32 1.0, %v592
        %v594 = vrcp.pop %v591
        %v595 = vmul.f32 1.0, %v594
        %v598 = vcombine.low %v593, %v595
        %v600 = vunpack.c.l.s4 1966171168
        %v601 = vunpack.c.0.s8 %v600
        %v602 = vlaneseq
        %v603 = vshrl.u32 %v602, 7
        %v604 = vsub.s32 %v601, %v603
        %v605 = vrot.slane %v598, %v604
        %v607 = vunpack.c.l.s4 1966171168
        %v608 = vunpack.c.0.s8 %v607
        %v609 = vlaneseq
        %v610 = vshrl.u32 %v609, 7
        %v611 = vsub.s32 %v608, %v610
        %v612 = vrot.slane %v605, %v611
        %v614 = vlaneseq
        %vm615 = vcmp.ge.s32.totalorder %v614, 0
        %vm616 = vcmp.lt.s32.totalorder %v614, 256
        %vm617 = vmand %vm615, %vm616
        %618 = vst.msk [vmem:[%s215] sm:$0x3] %vm617, %v612
        %s619 = sand.u32 %s98, 1
        %s620 = scalar_lea.sflag [#allocation4], %s619
        %s621 = sand.u32 %s98, 1
        %s622 = smul.addr %s621, 2
        %s623 = scalar_lea.vmem [#allocation9], %s622
        // Predicated region
        $region45: #{tpu_custom_call.1} parent=31 // pred_check
          %p624 = pneg %p108
        $region46: #{tpu_custom_call.1} parent=31 // pred_check_branch
          %626 = sbr.rel (%p624) target = $region48
        $region47: #{tpu_custom_call.1} parent=31 // pred_region
          %s628 = ssub.s32 32, 32
          %629 = vsyncadd %s620, %s628
          %s630 = smul.addr %s22, 2
          %s631 = smul.addr %s630, 16
          %s632 = scalar_lea.hbm %s3, %s631
          %s634 = sshll.u32 %s623, 4
          %s635 = int_to_ptr.vmem [resolvable:$true] %s634
          %637 = dma.vmem_to_hbm [thread:$0]  %s635, 32, %s632, %s620
        $region48: #{tpu_custom_call.1} parent=31 // pred_fallthru
          _
      $region32: #{tpu_custom_call.1} parent=5 // pred_fallthru
        _
      %p638 = scmp.le.s32.totalorder 2, %s17
      // Predicated region
      $region49: #{tpu_custom_call.1} parent=5 // pred_check
        %p639 = pneg %p638
      $region50: #{tpu_custom_call.1} parent=5 // pred_check_branch
        %641 = sbr.rel (%p639) target = $region52
      $region51: #{tpu_custom_call.1} parent=5 // pred_region
        %s642 = ssub.s32 %s17, 2
        // Predicated region
        $region53: #{tpu_custom_call.1} parent=51 // pred_check
          %p643 = pneg %p114
        $region54: #{tpu_custom_call.1} parent=51 // pred_check_branch
          %645 = sbr.rel (%p643) target = $region56
        $region55: #{tpu_custom_call.1} parent=51 // pred_region
          %s646 = sand.u32 %s99, 1
          %s647 = scalar_lea.sflag [#allocation4], %s646
          %s648 = sand.u32 %s99, 1
          %s649 = smul.addr %s648, 2
          %s650 = scalar_lea.vmem [#allocation9], %s649
          %651 = dma.done %s647, 32
        $region56: #{tpu_custom_call.1} parent=51 // pred_fallthru
          _
      $region52: #{tpu_custom_call.1} parent=5 // pred_fallthru
        _
    $region6: #{tpu_custom_call.1} parent=1 // loop_footer
      %s21 = sadd.s32 1, %s17
    $region7: #{tpu_custom_call.1} parent=1 // loop_footer_branch
      %16 = sbr.rel target = $region3
    $region8: #{tpu_custom_call.1} parent=1 // loop_exit
      _
    %652 = vsyncpa [#allocation3], 1
    %s653 = scalar_lea.sflag [#allocation3], 1
    %654 = vsyncpa %s653, 1
    %655 = vsyncpa [#allocation8], 1
    %656 = vsyncpa [#allocation4], 1
    %s657 = scalar_lea.sflag [#allocation4], 1
    %658 = vsyncpa %s657, 1
    %659 = vsyncpa [#allocation5], 1
    %s660 = scalar_lea.sflag [#allocation5], 1
    %661 = vsyncpa %s660, 1

</llo_original>
